<compile_context>
chip_gen: v5e
topology: v5e:2x2
jax: 0.10.0
libtpu: 0.0.40
codegen_flags: <defaults>
</compile_context>

<pallas_src>
import functools

import numpy as np
import jax
import jax.numpy as jnp
from jax.experimental import pallas as pl
from jax.experimental.pallas import tpu as pltpu


def _gauss_taps(kernel_size, sigma):
    """Mirror gaussian_kernel() from the PyTorch module (float32 math)."""
    K = int(kernel_size)
    if K % 2 == 0:
        K += 1
    t = (np.arange(K) - K // 2).astype(np.float32)
    w = np.exp(-0.5 * (t / np.float32(sigma)) ** 2).astype(np.float32)
    w = (w / w.sum()).astype(np.float32)
    return tuple(float(v) for v in w)


def _gauss_conv_kernel(x_ref, o_ref, *, taps, pad):
    # x_ref: VMEM (T, tile_n)  -- time on sublanes, pixels (C*H*W) on lanes
    # o_ref: VMEM (T, tile_n)  -- lane-dense output (unmasked stores)
    x = x_ref[...].astype(jnp.float32)
    T, n = x.shape

    # Replicate padding along time, built in VMEM (no HBM copy).
    if pad > 0:
        xp = jnp.concatenate(
            [jnp.broadcast_to(x[:1, :], (pad, n)),
             x,
             jnp.broadcast_to(x[-1:, :], (pad, n))],
            axis=0)                                  # (T + 2*pad, n)
    else:
        xp = x

    # Cross-correlation (PyTorch Conv1d convention): y[t] = sum_k w[k] * xp[t + k].
    # Taps are Python float constants -> folded into the multiplies.
    acc = taps[0] * xp[0:T, :]
    for k in range(1, len(taps)):
        acc = acc + taps[k] * xp[k:k + T, :]
    # TODO(synk): for large K/T this tap loop could become a single MXU matmul
    # against a constant banded matrix; unnecessary at these sizes.
    o_ref[...] = acc.astype(o_ref.dtype)


def gaussian_filter_1d(x, kernel_size, sigma, tile_n=8192):
    """x: (T, C, H, W) float32 -> (T, C, H, W) float32, gaussian-smoothed over T."""
    T, C, H, W = x.shape

    taps = _gauss_taps(kernel_size, sigma)
    # Padding uses the ORIGINAL kernel_size (exactly like the PyTorch module);
    # valid-conv output length T + 2*pad - K + 1 == T for both even and odd
    # kernel_size, so the output shape equals the input shape.
    pad = int(kernel_size) // 2

    N = C * H * W
    x2 = x.reshape(T, N)   # free row-major view: time stays the leading axis

    # Lane tile: large multiple of 128, capped so double-buffered in/out +
    # the in-VMEM padded slab + accumulator stay within a conservative budget
    # that fits all generations' default scoped VMEM.
    lanes = max(128, ((N + 127) // 128) * 128)
    bytes_per_lane = 4 * (6 * T + 2 * pad)          # rough per-lane VMEM footprint
    max_tile = max(128, ((8 * 1024 * 1024) // bytes_per_lane) // 128 * 128)
    tile_n = max(128, (min(int(tile_n), lanes, max_tile) // 128) * 128)

    grid = (pl.cdiv(N, tile_n),)

    out = pl.pallas_call(
        functools.partial(_gauss_conv_kernel, taps=taps, pad=pad),
        out_shape=jax.ShapeDtypeStruct((T, N), x.dtype),
        grid=grid,
        in_specs=[pl.BlockSpec((T, tile_n), lambda i: (0, i))],
        out_specs=pl.BlockSpec((T, tile_n), lambda i: (0, i)),
        compiler_params=pltpu.CompilerParams(
            dimension_semantics=("parallel",),      # megacore-shard the lane tiles
        ),
    )(x2)

    return out.reshape(T, C, H, W)


def _reference(x, kernel_size, sigma):
    """Pure-JAX reference reproducing the PyTorch forward (with the permutes)."""
    T, C, H, W = x.shape
    K = int(kernel_size)
    if K % 2 == 0:
        K += 1
    t = jnp.arange(K, dtype=jnp.float32) - (K // 2)
    w = jnp.exp(-0.5 * (t / sigma) ** 2)
    w = w / jnp.sum(w)
    pad = int(kernel_size) // 2
    L = T + 2 * pad - K + 1
    N = C * H * W
    x2 = jnp.transpose(x, (1, 2, 3, 0)).reshape(N, T)
    xp = jnp.concatenate(
        [jnp.repeat(x2[:, :1], pad, axis=1), x2, jnp.repeat(x2[:, -1:], pad, axis=1)],
        axis=1,
    )
    y = sum(w[k] * xp[:, k:k + L] for k in range(K))
    return jnp.transpose(y.reshape(C, H, W, L), (3, 0, 1, 2))


if __name__ == "__main__":
    key = jax.random.PRNGKey(0)
    T, C, H, W = 8, 4, 16, 16
    x = jax.random.normal(key, (T, C, H, W), dtype=jnp.float32)

    # Odd kernel size, single lane tile.
    y1 = jax.block_until_ready(gaussian_filter_1d(x, 5, 1.5))
    r1 = jax.block_until_ready(_reference(x, 5, 1.5))
    assert y1.shape == (T, C, H, W), y1.shape
    assert jnp.allclose(y1, r1, atol=1e-5, rtol=1e-5), "mismatch vs reference (K=5)"

    # Even kernel size (module bumps K to K+1 but pads with kernel_size//2),
    # small tile to exercise a multi-step grid.
    y2 = jax.block_until_ready(gaussian_filter_1d(x, 4, 1.2, tile_n=256))
    r2 = jax.block_until_ready(_reference(x, 4, 1.2))
    assert jnp.allclose(y2, r2, atol=1e-5, rtol=1e-5), "mismatch vs reference (K=4)"

    print("KERNEL_OK")
</pallas_src>

<mosaic_0001>
module attributes {stable_mosaic.version = 11 : i64} {
  func.func @_gauss_conv_kernel(%arg0: i32, %arg1: memref<8x1024xf32, #tpu.memory_space<vmem>>, %arg2: memref<8x1024xf32, #tpu.memory_space<vmem>>) attributes {dimension_semantics = [#tpu.dimension_semantics<parallel>], iteration_bounds = array<i64: 1>, scalar_prefetch = 0 : i64, scratch_operands = 0 : i64, tpu.core_type = #tpu.core_type<tc>, window_params = [{transform_indices = @transform_0, window_bounds = array<i64: 8, 1024>}, {transform_indices = @transform_1, window_bounds = array<i64: 8, 1024>}]} {
    %c0 = arith.constant 0 : index
    %c0_0 = arith.constant 0 : index
    %0 = vector.load %arg1[%c0, %c0_0] : memref<8x1024xf32, #tpu.memory_space<vmem>>, vector<8x1024xf32>
    %1 = vector.extract_strided_slice %0 {offsets = [0, 0], sizes = [1, 1024], strides = [1, 1]} : vector<8x1024xf32> to vector<1x1024xf32>
    %2 = vector.shape_cast %1 : vector<1x1024xf32> to vector<1x1024xf32>
    %3 = vector.broadcast %2 : vector<1x1024xf32> to vector<2x1024xf32>
    %4 = vector.extract_strided_slice %0 {offsets = [7, 0], sizes = [1, 1024], strides = [1, 1]} : vector<8x1024xf32> to vector<1x1024xf32>
    %5 = vector.shape_cast %4 : vector<1x1024xf32> to vector<1x1024xf32>
    %6 = vector.broadcast %5 : vector<1x1024xf32> to vector<2x1024xf32>
    %7 = tpu.concatenate %3, %0, %6 in 0 : vector<2x1024xf32>, vector<8x1024xf32>, vector<2x1024xf32> -> vector<12x1024xf32>
    %8 = vector.extract_strided_slice %7 {offsets = [0, 0], sizes = [8, 1024], strides = [1, 1]} : vector<12x1024xf32> to vector<8x1024xf32>
    %cst = arith.constant 0.12007837 : f32
    %9 = vector.broadcast %cst : f32 to vector<8x1024xf32>
    %10 = arith.mulf %9, %8 : vector<8x1024xf32>
    %11 = vector.extract_strided_slice %7 {offsets = [1, 0], sizes = [8, 1024], strides = [1, 1]} : vector<12x1024xf32> to vector<8x1024xf32>
    %cst_1 = arith.constant 0.233880743 : f32
    %12 = vector.broadcast %cst_1 : f32 to vector<8x1024xf32>
    %13 = arith.mulf %12, %11 : vector<8x1024xf32>
    %14 = arith.addf %10, %13 : vector<8x1024xf32>
    %15 = vector.extract_strided_slice %7 {offsets = [2, 0], sizes = [8, 1024], strides = [1, 1]} : vector<12x1024xf32> to vector<8x1024xf32>
    %cst_2 = arith.constant 0.292081714 : f32
    %16 = vector.broadcast %cst_2 : f32 to vector<8x1024xf32>
    %17 = arith.mulf %16, %15 : vector<8x1024xf32>
    %18 = arith.addf %14, %17 : vector<8x1024xf32>
    %19 = vector.extract_strided_slice %7 {offsets = [3, 0], sizes = [8, 1024], strides = [1, 1]} : vector<12x1024xf32> to vector<8x1024xf32>
    %cst_3 = arith.constant 0.233880743 : f32
    %20 = vector.broadcast %cst_3 : f32 to vector<8x1024xf32>
    %21 = arith.mulf %20, %19 : vector<8x1024xf32>
    %22 = arith.addf %18, %21 : vector<8x1024xf32>
    %23 = vector.extract_strided_slice %7 {offsets = [4, 0], sizes = [8, 1024], strides = [1, 1]} : vector<12x1024xf32> to vector<8x1024xf32>
    %cst_4 = arith.constant 0.12007837 : f32
    %24 = vector.broadcast %cst_4 : f32 to vector<8x1024xf32>
    %25 = arith.mulf %24, %23 : vector<8x1024xf32>
    %26 = arith.addf %22, %25 : vector<8x1024xf32>
    %c0_5 = arith.constant 0 : index
    %c0_6 = arith.constant 0 : index
    %27 = vector.load %arg2[%c0_5, %c0_6] : memref<8x1024xf32, #tpu.memory_space<vmem>>, vector<8x1024xf32>
    tpu.vector_store %arg2[%c0_5, %c0_6], %26 {strides = array<i32>} : memref<8x1024xf32, #tpu.memory_space<vmem>>, vector<8x1024xf32>,
    return
  }
  func.func @transform_0(%arg0: i32) -> (i32, i32) {
    %c0_i32 = arith.constant 0 : i32
    %c0_i32_0 = arith.constant 0 : i32
    return %c0_i32, %arg0 : i32, i32
  }
  func.func @transform_1(%arg0: i32) -> (i32, i32) {
    %c0_i32 = arith.constant 0 : i32
    %c0_i32_0 = arith.constant 0 : i32
    return %c0_i32, %arg0 : i32, i32
  }
}

</mosaic_0001>

<llo_original>
// kernel: tpu_custom_call.1
$region0: #{tpu_custom_call.1}
  #allocation0 [shape = 'u32[]', space=smem, size = 0x4, offset = 0x4, fixed_abs, tag = 'smem constant byte address 0x4 - core index']
  #allocation1 [shape = 'u32[72,128]{1,0:T(1,128)}', space=vmem, size = 0x9000, scoped, tag = 'internal scratch']
  %s0 = inlined_call_operand.hbm [shape: f32[8,1024], index: 0, kind: input, shape index: {}]
  %s1 = inlined_call_operand.hbm [shape: f32[8,1024], index: 1, kind: output, shape index: {}]
  %s2 = sld [smem:[#allocation0]]
  $region18: #{tpu_custom_call.1} parent=0
    _
  %s4 = ssub.s32 1, %s2
  %s5 = scalar_select 0, %s4, %s2
  $region1: #{tpu_custom_call.1} parent=0
    #allocation2 [shape = 'u8[32768]{0}', space=vmem, size = 0x8000, scoped, tag = 'input window, operand 0, single buffered']
    #allocation3 [shape = 's32[1]{0}', space=sflag, size = 0x4, scoped, tag = 'scoped memory for tpu_custom_call.1']
    #allocation4 [shape = 's32[1]{0}', space=sflag, size = 0x4, scoped, tag = 'scoped memory for tpu_custom_call.1']
    #allocation5 [shape = 'u8[32768]{0}', space=vmem, size = 0x8000, scoped, tag = 'output window, operand 0, single buffered']
    %6 = vsyncpa [#allocation3], 0
    %7 = vsyncpa [#allocation4], 0
    // Predicated region
    $region2: #{tpu_custom_call.1} parent=1 // pred_check
      _
    $region3: #{tpu_custom_call.1} parent=1 // pred_check_branch
      %9 = sbr.rel (0) target = $region5
    $region4: #{tpu_custom_call.1} parent=1 // pred_region
      %11 = vsyncadd [#allocation3], 0
      %s13 = sshll.u32 %s0, 4
      %s14 = int_to_ptr.hbm [resolvable:$true] %s13
      %s15 = sshll.u32 [#allocation2], 4
      %s16 = int_to_ptr.vmem [resolvable:$true] %s15
      %18 = dma.hbm_to_vmem [thread:$0]  %s14, 1024, %s16, [#allocation3]
    $region5: #{tpu_custom_call.1} parent=1 // pred_fallthru
      _
    // Predicated region
    $region6: #{tpu_custom_call.1} parent=1 // pred_check
      _
    $region7: #{tpu_custom_call.1} parent=1 // pred_check_branch
      %20 = sbr.rel (0) target = $region9
    $region8: #{tpu_custom_call.1} parent=1 // pred_region
      %22 = dma.done [#allocation3], 1024
    $region9: #{tpu_custom_call.1} parent=1 // pred_fallthru
      _
    %v23 = vld [vmem:[#allocation2] sm:$0xff]
    %v24 = vld [vmem:[#allocation2 + $0x8] sm:$0xff]
    %v25 = vld [vmem:[#allocation2 + $0x10] sm:$0xff]
    %v26 = vld [vmem:[#allocation2 + $0x18] sm:$0xff]
    %v27 = vld [vmem:[#allocation2 + $0x20] sm:$0xff]
    %v28 = vld [vmem:[#allocation2 + $0x28] sm:$0xff]
    %v29 = vld [vmem:[#allocation2 + $0x30] sm:$0xff]
    %v30 = vld [vmem:[#allocation2 + $0x38] sm:$0xff]
    %v31 = vperm.slane %v23, 0
    %v32 = vperm.slane %v24, 0
    %v33 = vperm.slane %v25, 0
    %v34 = vperm.slane %v26, 0
    %v35 = vperm.slane %v27, 0
    %v36 = vperm.slane %v28, 0
    %v37 = vperm.slane %v29, 0
    %v38 = vperm.slane %v30, 0
    %v39 = vperm.slane %v23, 7
    %v40 = vperm.slane %v24, 7
    %v41 = vperm.slane %v25, 7
    %v42 = vperm.slane %v26, 7
    %v43 = vperm.slane %v27, 7
    %v44 = vperm.slane %v28, 7
    %v45 = vperm.slane %v29, 7
    %v46 = vperm.slane %v30, 7
    %v55 = vrot.slane %v23, 6
    %v56 = vrot.slane %v24, 6
    %v57 = vrot.slane %v25, 6
    %v58 = vrot.slane %v26, 6
    %v59 = vrot.slane %v27, 6
    %v60 = vrot.slane %v28, 6
    %v61 = vrot.slane %v29, 6
    %v62 = vrot.slane %v30, 6
    %vm71 = vcmask 1041408
    %v72 = vsel %vm71, %v31, %v55
    %v73 = vsel %vm71, %v32, %v56
    %v74 = vsel %vm71, %v33, %v57
    %v75 = vsel %vm71, %v34, %v58
    %v76 = vsel %vm71, %v35, %v59
    %v77 = vsel %vm71, %v36, %v60
    %v78 = vsel %vm71, %v37, %v61
    %v79 = vsel %vm71, %v38, %v62
    %v80 = vsel %vm71, %v55, %v39
    %v81 = vsel %vm71, %v56, %v40
    %v82 = vsel %vm71, %v57, %v41
    %v83 = vsel %vm71, %v58, %v42
    %v84 = vsel %vm71, %v59, %v43
    %v85 = vsel %vm71, %v60, %v44
    %v86 = vsel %vm71, %v61, %v45
    %v87 = vsel %vm71, %v62, %v46
    %v88 = vmul.f32 %v72, 0.12007837
    %v89 = vmul.f32 %v73, 0.12007837
    %v90 = vmul.f32 %v74, 0.12007837
    %v91 = vmul.f32 %v75, 0.12007837
    %v92 = vmul.f32 %v76, 0.12007837
    %v93 = vmul.f32 %v77, 0.12007837
    %v94 = vmul.f32 %v78, 0.12007837
    %v95 = vmul.f32 %v79, 0.12007837
    %v96 = vmul.f32 %v72, 0.23388074
    %v97 = vmul.f32 %v73, 0.23388074
    %v98 = vmul.f32 %v74, 0.23388074
    %v99 = vmul.f32 %v75, 0.23388074
    %v100 = vmul.f32 %v76, 0.23388074
    %v101 = vmul.f32 %v77, 0.23388074
    %v102 = vmul.f32 %v78, 0.23388074
    %v103 = vmul.f32 %v79, 0.23388074
    %v104 = vmul.f32 %v80, 0.23388074
    %v105 = vmul.f32 %v81, 0.23388074
    %v106 = vmul.f32 %v82, 0.23388074
    %v107 = vmul.f32 %v83, 0.23388074
    %v108 = vmul.f32 %v84, 0.23388074
    %v109 = vmul.f32 %v85, 0.23388074
    %v110 = vmul.f32 %v86, 0.23388074
    %v111 = vmul.f32 %v87, 0.23388074
    %vm128 = vcmask 1046528
    %v129 = vrot.slane %v96, 1
    %v130 = vrot.slane %v104, 1
    %v131 = vsel %vm128, %v129, %v130
    %v132 = vrot.slane %v97, 1
    %v133 = vrot.slane %v105, 1
    %v134 = vsel %vm128, %v132, %v133
    %v135 = vrot.slane %v98, 1
    %v136 = vrot.slane %v106, 1
    %v137 = vsel %vm128, %v135, %v136
    %v138 = vrot.slane %v99, 1
    %v139 = vrot.slane %v107, 1
    %v140 = vsel %vm128, %v138, %v139
    %v141 = vrot.slane %v100, 1
    %v142 = vrot.slane %v108, 1
    %v143 = vsel %vm128, %v141, %v142
    %v144 = vrot.slane %v101, 1
    %v145 = vrot.slane %v109, 1
    %v146 = vsel %vm128, %v144, %v145
    %v147 = vrot.slane %v102, 1
    %v148 = vrot.slane %v110, 1
    %v149 = vsel %vm128, %v147, %v148
    %v150 = vrot.slane %v103, 1
    %v151 = vrot.slane %v111, 1
    %v152 = vsel %vm128, %v150, %v151
    %v161 = vadd.f32 %v88, %v131
    %v162 = vadd.f32 %v89, %v134
    %v163 = vadd.f32 %v90, %v137
    %v164 = vadd.f32 %v91, %v140
    %v165 = vadd.f32 %v92, %v143
    %v166 = vadd.f32 %v93, %v146
    %v167 = vadd.f32 %v94, %v149
    %v168 = vadd.f32 %v95, %v152
    %v169 = vmul.f32 %v72, 0.2920817
    %v170 = vmul.f32 %v73, 0.2920817
    %v171 = vmul.f32 %v74, 0.2920817
    %v172 = vmul.f32 %v75, 0.2920817
    %v173 = vmul.f32 %v76, 0.2920817
    %v174 = vmul.f32 %v77, 0.2920817
    %v175 = vmul.f32 %v78, 0.2920817
    %v176 = vmul.f32 %v79, 0.2920817
    %v177 = vmul.f32 %v80, 0.2920817
    %v178 = vmul.f32 %v81, 0.2920817
    %v179 = vmul.f32 %v82, 0.2920817
    %v180 = vmul.f32 %v83, 0.2920817
    %v181 = vmul.f32 %v84, 0.2920817
    %v182 = vmul.f32 %v85, 0.2920817
    %v183 = vmul.f32 %v86, 0.2920817
    %v184 = vmul.f32 %v87, 0.2920817
    %vm201 = vcmask 1045504
    %v202 = vrot.slane %v169, 2
    %v203 = vrot.slane %v177, 2
    %v204 = vsel %vm201, %v202, %v203
    %v205 = vrot.slane %v170, 2
    %v206 = vrot.slane %v178, 2
    %v207 = vsel %vm201, %v205, %v206
    %v208 = vrot.slane %v171, 2
    %v209 = vrot.slane %v179, 2
    %v210 = vsel %vm201, %v208, %v209
    %v211 = vrot.slane %v172, 2
    %v212 = vrot.slane %v180, 2
    %v213 = vsel %vm201, %v211, %v212
    %v214 = vrot.slane %v173, 2
    %v215 = vrot.slane %v181, 2
    %v216 = vsel %vm201, %v214, %v215
    %v217 = vrot.slane %v174, 2
    %v218 = vrot.slane %v182, 2
    %v219 = vsel %vm201, %v217, %v218
    %v220 = vrot.slane %v175, 2
    %v221 = vrot.slane %v183, 2
    %v222 = vsel %vm201, %v220, %v221
    %v223 = vrot.slane %v176, 2
    %v224 = vrot.slane %v184, 2
    %v225 = vsel %vm201, %v223, %v224
    %v234 = vadd.f32 %v161, %v204
    %v235 = vadd.f32 %v162, %v207
    %v236 = vadd.f32 %v163, %v210
    %v237 = vadd.f32 %v164, %v213
    %v238 = vadd.f32 %v165, %v216
    %v239 = vadd.f32 %v166, %v219
    %v240 = vadd.f32 %v167, %v222
    %v241 = vadd.f32 %v168, %v225
    %vm242 = vcmask 1044480
    %v243 = vrot.slane %v96, 3
    %v244 = vrot.slane %v104, 3
    %v245 = vsel %vm242, %v243, %v244
    %v246 = vrot.slane %v97, 3
    %v247 = vrot.slane %v105, 3
    %v248 = vsel %vm242, %v246, %v247
    %v249 = vrot.slane %v98, 3
    %v250 = vrot.slane %v106, 3
    %v251 = vsel %vm242, %v249, %v250
    %v252 = vrot.slane %v99, 3
    %v253 = vrot.slane %v107, 3
    %v254 = vsel %vm242, %v252, %v253
    %v255 = vrot.slane %v100, 3
    %v256 = vrot.slane %v108, 3
    %v257 = vsel %vm242, %v255, %v256
    %v258 = vrot.slane %v101, 3
    %v259 = vrot.slane %v109, 3
    %v260 = vsel %vm242, %v258, %v259
    %v261 = vrot.slane %v102, 3
    %v262 = vrot.slane %v110, 3
    %v263 = vsel %vm242, %v261, %v262
    %v264 = vrot.slane %v103, 3
    %v265 = vrot.slane %v111, 3
    %v266 = vsel %vm242, %v264, %v265
    %v275 = vadd.f32 %v234, %v245
    %v276 = vadd.f32 %v235, %v248
    %v277 = vadd.f32 %v236, %v251
    %v278 = vadd.f32 %v237, %v254
    %v279 = vadd.f32 %v238, %v257
    %v280 = vadd.f32 %v239, %v260
    %v281 = vadd.f32 %v240, %v263
    %v282 = vadd.f32 %v241, %v266
    %v283 = vmul.f32 %v80, 0.12007837
    %v284 = vmul.f32 %v81, 0.12007837
    %v285 = vmul.f32 %v82, 0.12007837
    %v286 = vmul.f32 %v83, 0.12007837
    %v287 = vmul.f32 %v84, 0.12007837
    %v288 = vmul.f32 %v85, 0.12007837
    %v289 = vmul.f32 %v86, 0.12007837
    %v290 = vmul.f32 %v87, 0.12007837
    %vm307 = vcmask 1043456
    %v308 = vrot.slane %v88, 4
    %v309 = vrot.slane %v283, 4
    %v310 = vsel %vm307, %v308, %v309
    %v311 = vrot.slane %v89, 4
    %v312 = vrot.slane %v284, 4
    %v313 = vsel %vm307, %v311, %v312
    %v314 = vrot.slane %v90, 4
    %v315 = vrot.slane %v285, 4
    %v316 = vsel %vm307, %v314, %v315
    %v317 = vrot.slane %v91, 4
    %v318 = vrot.slane %v286, 4
    %v319 = vsel %vm307, %v317, %v318
    %v320 = vrot.slane %v92, 4
    %v321 = vrot.slane %v287, 4
    %v322 = vsel %vm307, %v320, %v321
    %v323 = vrot.slane %v93, 4
    %v324 = vrot.slane %v288, 4
    %v325 = vsel %vm307, %v323, %v324
    %v326 = vrot.slane %v94, 4
    %v327 = vrot.slane %v289, 4
    %v328 = vsel %vm307, %v326, %v327
    %v329 = vrot.slane %v95, 4
    %v330 = vrot.slane %v290, 4
    %v331 = vsel %vm307, %v329, %v330
    %v340 = vadd.f32 %v275, %v310
    %v341 = vadd.f32 %v276, %v313
    %v342 = vadd.f32 %v277, %v316
    %v343 = vadd.f32 %v278, %v319
    %v344 = vadd.f32 %v279, %v322
    %v345 = vadd.f32 %v280, %v325
    %v346 = vadd.f32 %v281, %v328
    %v347 = vadd.f32 %v282, %v331
    %348 = vst [vmem:[#allocation5] sm:$0xff] %v340
    %349 = vst [vmem:[#allocation5 + $0x8] sm:$0xff] %v341
    %350 = vst [vmem:[#allocation5 + $0x10] sm:$0xff] %v342
    %351 = vst [vmem:[#allocation5 + $0x18] sm:$0xff] %v343
    %352 = vst [vmem:[#allocation5 + $0x20] sm:$0xff] %v344
    %353 = vst [vmem:[#allocation5 + $0x28] sm:$0xff] %v345
    %354 = vst [vmem:[#allocation5 + $0x30] sm:$0xff] %v346
    %355 = vst [vmem:[#allocation5 + $0x38] sm:$0xff] %v347
    // Predicated region
    $region10: #{tpu_custom_call.1} parent=1 // pred_check
      _
    $region11: #{tpu_custom_call.1} parent=1 // pred_check_branch
      %357 = sbr.rel (0) target = $region13
    $region12: #{tpu_custom_call.1} parent=1 // pred_region
      %359 = vsyncadd [#allocation4], 0
      %s361 = sshll.u32 [#allocation5], 4
      %s362 = int_to_ptr.vmem [resolvable:$true] %s361
      %s363 = sshll.u32 %s1, 4
      %s364 = int_to_ptr.hbm [resolvable:$true] %s363
      %366 = dma.vmem_to_hbm [thread:$0]  %s362, 1024, %s364, [#allocation4]
    $region13: #{tpu_custom_call.1} parent=1 // pred_fallthru
      _
    // Predicated region
    $region14: #{tpu_custom_call.1} parent=1 // pred_check
      _
    $region15: #{tpu_custom_call.1} parent=1 // pred_check_branch
      %368 = sbr.rel (0) target = $region17
    $region16: #{tpu_custom_call.1} parent=1 // pred_region
      %370 = dma.done [#allocation4], 1024
    $region17: #{tpu_custom_call.1} parent=1 // pred_fallthru
      _
    %371 = vsyncpa [#allocation3], 1
    %372 = vsyncpa [#allocation4], 1

</llo_original>
